<compile_context>
chip_gen: v7x
topology: tpu7x:2x2x1
jax: 0.10.0
libtpu: 0.0.40
codegen_flags: <defaults>
</compile_context>

<pallas_src>
import functools

import jax
import jax.numpy as jnp
from jax.experimental import pallas as pl
from jax.experimental.pallas import tpu as pltpu

ALPHA = 0.25
GAMMA = 2.0


def _default_n_split():
    """2 outer slices on dual-TensorCore chips (v4/v5p/v7x), else 1."""
    try:
        kind = jax.devices()[0].device_kind.lower()
    except Exception:  # pragma: no cover - be conservative
        return 2
    return 2 if any(tag in kind for tag in ("v4", "v5p", "v7")) else 1


def _focal_loss_kernel(conf_ref, labels_ref, out_ref, acc_ref, *,
                       alpha, gamma, rows, block_rows, n_inner, need_mask):
    inner = pl.program_id(1)

    @pl.when(inner == 0)
    def _():
        acc_ref[...] = jnp.zeros_like(acc_ref)

    x = conf_ref[...].astype(jnp.float32)      # logits (confidence.float())
    z = labels_ref[...].astype(jnp.float32)    # labels

    is_pos = z == 1.0
    alpha_t = jnp.where(is_pos, alpha, 1.0 - alpha)

    # One shared exp for both BCE and sigmoid (EUP diet):
    #   ce = max(x,0) - x*z + log1p(exp(-|x|))           (stable BCEWithLogits)
    #   p  = sigmoid(x) = [x>=0 ? 1 : e] / (1 + e)        (stable, exact)
    e = jnp.exp(-jnp.abs(x))
    ce = jnp.maximum(x, 0.0) - x * z + jnp.log1p(e)
    p = jnp.where(x >= 0.0, 1.0, e) / (1.0 + e)
    one_minus_pt = jnp.where(is_pos, 1.0 - p, p)   # == 1 - pt (PyTorch's pt)

    if gamma == 2.0:
        focal = one_minus_pt * one_minus_pt         # VALU square, no power()
    else:
        focal = jnp.power(one_minus_pt, gamma)      # generic fallback

    loss = alpha_t * focal * ce

    if need_mask:
        # Ragged last row-block: zero rows past the true row count.  The mask
        # is per-row (block_rows x 1) so the extra VPU work is ~1 op/element.
        gidx = pl.program_id(0) * n_inner + inner
        row_ids = gidx * block_rows + jax.lax.broadcasted_iota(
            jnp.int32, (block_rows, 1), 0)
        loss = jnp.where(row_ids < rows, loss, 0.0)

    acc_ref[...] += loss                            # pure VPU accumulation

    @pl.when(inner == pl.num_programs(1) - 1)
    def _():
        # Single cross-sublane reduce per outer slice; cross-lane sum + divide
        # happen in the wrapper on a tiny (n_outer, 1, L) array.
        out_ref[...] = jnp.sum(acc_ref[...], axis=0, keepdims=True)[None]


def _focal_loss_fallback(confidence, labels, alpha, gamma):
    """Same math, plain XLA (fused elementwise + reduce)."""
    x = confidence.astype(jnp.float32)
    z = labels.astype(jnp.float32)
    alpha_t = jnp.where(z == 1.0, alpha, 1.0 - alpha)
    e = jnp.exp(-jnp.abs(x))
    ce = jnp.maximum(x, 0.0) - x * z + jnp.log1p(e)
    p = jnp.where(x >= 0.0, 1.0, e) / (1.0 + e)
    one_minus_pt = jnp.where(z == 1.0, 1.0 - p, p)
    return jnp.mean(alpha_t * (one_minus_pt ** gamma) * ce)


def focal_loss_v1(confidence, predicted_locations, labels, gt_locations,
                  alpha=ALPHA, gamma=GAMMA, *, max_block_rows=512,
                  n_split=None, lane_candidates=(512, 256, 128)):
    """Pallas implementation of FocalLossV1.forward (reduction='mean')."""
    del predicted_locations, gt_locations  # unused by FocalLossV1.forward

    total = confidence.size

    # Pick the lane width: a divisor of the element count so the lane-dense
    # 2-D view is a FREE row-major reshape (no HBM padding/slicing copy).
    # Prefer the largest L that still gives >= 8 rows (full sublane tiles).
    L = None
    for cand in lane_candidates:
        if total % cand == 0 and total // cand >= 8:
            L = cand
            break
    if L is None:
        for cand in lane_candidates:
            if total % cand == 0:
                L = cand
                break

    if L is None or total < 1024:
        # TODO(synk): ragged totals (not a multiple of 128) could use a manual
        # memory_space=pl.ANY + make_async_copy chunked kernel to stay
        # zero-copy; the XLA fallback below is already bandwidth-bound.
        return _focal_loss_fallback(confidence, labels, float(alpha),
                                    float(gamma))

    rows = total // L
    max_block_rows = max(8, (int(max_block_rows) // 8) * 8)
    # block_rows is either the full row extent (always legal) or a multiple
    # of 8 (satisfies the (8,128) block constraint).
    block_rows = rows if rows <= max_block_rows else max_block_rows
    blocks = pl.cdiv(rows, block_rows)

    if n_split is None:
        n_split = _default_n_split()
    n_outer = n_split if blocks >= n_split else 1
    n_inner = pl.cdiv(blocks, n_outer)
    need_mask = (n_outer * n_inner * block_rows != rows)

    # Free reshapes (row-major bitcast) -- no extra HBM traffic.
    conf2d = confidence.reshape(rows, L)
    lab2d = labels.reshape(rows, L)

    kernel = functools.partial(
        _focal_loss_kernel, alpha=float(alpha), gamma=float(gamma),
        rows=rows, block_rows=block_rows, n_inner=n_inner,
        need_mask=need_mask)

    last_block = blocks - 1
    if n_outer * n_inner == blocks:
        def in_index(o, i):
            return (o * n_inner + i, 0)
    else:
        # Grid overshoots the block count: clamp so every DMA start is in
        # bounds; the row mask zeroes the duplicated block's contribution.
        def in_index(o, i):
            return (jnp.minimum(o * n_inner + i, last_block), 0)

    in_bytes = (conf2d.size * conf2d.dtype.itemsize
                + lab2d.size * lab2d.dtype.itemsize)
    cost = pl.CostEstimate(
        flops=18 * total,
        transcendentals=3 * total,           # exp, log1p, divide
        bytes_accessed=in_bytes + n_outer * L * 4)

    partials = pl.pallas_call(
        kernel,
        out_shape=jax.ShapeDtypeStruct((n_outer, 1, L), jnp.float32),
        grid_spec=pltpu.PrefetchScalarGridSpec(
            num_scalar_prefetch=0,
            grid=(n_outer, n_inner),
            in_specs=[
                pl.BlockSpec((block_rows, L), in_index),
                pl.BlockSpec((block_rows, L), in_index),
            ],
            out_specs=pl.BlockSpec((1, 1, L), lambda o, i: (o, 0, 0)),
            scratch_shapes=[pltpu.VMEM((block_rows, L), jnp.float32)],
        ),
        compiler_params=pltpu.CompilerParams(
            dimension_semantics=("parallel", "arbitrary")),
        cost_estimate=cost,
    )(conf2d, lab2d)

    return jnp.sum(partials) / jnp.float32(total)   # reduction='mean'


def _focal_loss_ref(confidence, labels, alpha=ALPHA, gamma=GAMMA):
    """Independent reference mirroring the PyTorch module (sigmoid + power)."""
    x = confidence.astype(jnp.float32)
    z = labels.astype(jnp.float32)
    alpha_t = jnp.where(z == 1.0, alpha, 1.0 - alpha)
    probs = jax.nn.sigmoid(x)
    pt = jnp.where(z == 1.0, probs, 1.0 - probs)
    ce = jnp.maximum(x, 0.0) - x * z + jnp.log1p(jnp.exp(-jnp.abs(x)))
    loss = alpha_t * jnp.power(1.0 - pt, gamma) * ce
    return loss.mean()


if __name__ == "__main__":
    key = jax.random.PRNGKey(0)
    k1, k2, k3, k4 = jax.random.split(key, 4)

    # Small shapes consistent with the SSD loss: (batch, num_priors, classes).
    N, P, C = 2, 64, 16
    confidence = jax.random.normal(k1, (N, P, C), dtype=jnp.float32) * 2.0
    labels = jax.random.bernoulli(k2, p=0.1, shape=(N, P, C)).astype(jnp.float32)
    predicted_locations = jax.random.normal(k3, (N, P, 4), dtype=jnp.float32)
    gt_locations = jax.random.normal(k4, (N, P, 4), dtype=jnp.float32)

    loss = focal_loss_v1(confidence, predicted_locations, labels, gt_locations)
    loss = jax.block_until_ready(loss)
    ref = _focal_loss_ref(confidence, labels)
    assert jnp.isfinite(loss), "loss is not finite"
    assert jnp.allclose(loss, ref, rtol=1e-4, atol=1e-6), (loss, ref)

    # Second case: multi-block grid, ragged last row-block (mask path) and a
    # 2-way outer split, to validate the accumulator / masking logic.
    k5, k6 = jax.random.split(k1)
    conf2 = jax.random.normal(k5, (2, 1000, 64), dtype=jnp.float32) * 2.0
    lab2 = jax.random.bernoulli(k6, p=0.05, shape=(2, 1000, 64)).astype(jnp.float32)
    loss2 = focal_loss_v1(conf2, None, lab2, None,
                          max_block_rows=64, n_split=2)
    loss2 = jax.block_until_ready(loss2)
    ref2 = _focal_loss_ref(conf2, lab2)
    assert jnp.isfinite(loss2), "loss2 is not finite"
    assert jnp.allclose(loss2, ref2, rtol=1e-4, atol=1e-6), (loss2, ref2)

    print("KERNEL_OK")
</pallas_src>

<mosaic_0001>
module attributes {stable_mosaic.version = 11 : i64} {
  func.func @_focal_loss_kernel(%arg0: i32, %arg1: i32, %arg2: memref<8x256xf32, #tpu.memory_space<vmem>>, %arg3: memref<8x256xf32, #tpu.memory_space<vmem>>, %arg4: memref<1x1x256xf32, #tpu.memory_space<vmem>>, %arg5: memref<8x256xf32, #tpu.memory_space<vmem>>) attributes {dimension_semantics = [#tpu.dimension_semantics<parallel>, #tpu.dimension_semantics<arbitrary>], iteration_bounds = array<i64: 1, 1>, scalar_prefetch = 0 : i64, scratch_operands = 1 : i64, tpu.core_type = #tpu.core_type<tc>, window_params = [{transform_indices = @transform_0, window_bounds = array<i64: 8, 256>}, {transform_indices = @transform_1, window_bounds = array<i64: 8, 256>}, {transform_indices = @transform_2, window_bounds = array<i64: 1, 1, 256>}]} {
    %c0_i32 = arith.constant 0 : i32
    %0 = arith.cmpi eq, %arg1, %c0_i32 : i32
    %1 = arith.extui %0 : i1 to i32
    %c0_i32_0 = arith.constant 0 : i32
    %2 = arith.cmpi ne, %1, %c0_i32_0 : i32
    scf.if %2 {
      %cst_18 = arith.constant 0.000000e+00 : f32
      %39 = vector.broadcast %cst_18 : f32 to vector<8x256xf32>
      %c0_19 = arith.constant 0 : index
      %c0_20 = arith.constant 0 : index
      %40 = vector.load %arg5[%c0_19, %c0_20] : memref<8x256xf32, #tpu.memory_space<vmem>>, vector<8x256xf32>
      tpu.vector_store %arg5[%c0_19, %c0_20], %39 {strides = array<i32>} : memref<8x256xf32, #tpu.memory_space<vmem>>, vector<8x256xf32>,
    } else {
    }
    %c0 = arith.constant 0 : index
    %c0_1 = arith.constant 0 : index
    %3 = vector.load %arg2[%c0, %c0_1] : memref<8x256xf32, #tpu.memory_space<vmem>>, vector<8x256xf32>
    %c0_2 = arith.constant 0 : index
    %c0_3 = arith.constant 0 : index
    %4 = vector.load %arg3[%c0_2, %c0_3] : memref<8x256xf32, #tpu.memory_space<vmem>>, vector<8x256xf32>
    %cst = arith.constant 1.000000e+00 : f32
    %5 = vector.broadcast %cst : f32 to vector<8x256xf32>
    %6 = arith.cmpf oeq, %4, %5 : vector<8x256xf32>
    %cst_4 = arith.constant 2.500000e-01 : f32
    %cst_5 = arith.constant 7.500000e-01 : f32
    %7 = vector.broadcast %cst_4 : f32 to vector<8x256xf32>
    %8 = vector.broadcast %cst_5 : f32 to vector<8x256xf32>
    %9 = arith.select %6, %7, %8 : vector<8x256xi1>, vector<8x256xf32>
    %10 = math.absf %3 : vector<8x256xf32>
    %cst_6 = arith.constant 0.000000e+00 : f32
    %11 = vector.broadcast %cst_6 : f32 to vector<8x256xf32>
    %12 = arith.subf %11, %10 : vector<8x256xf32>
    %13 = math.exp %12 : vector<8x256xf32>
    %cst_7 = arith.constant 0.000000e+00 : f32
    %14 = vector.broadcast %cst_7 : f32 to vector<8x256xf32>
    %15 = arith.maximumf %3, %14 : vector<8x256xf32>
    %16 = arith.mulf %3, %4 : vector<8x256xf32>
    %17 = arith.subf %15, %16 : vector<8x256xf32>
    %18 = math.log1p %13 : vector<8x256xf32>
    %19 = arith.addf %17, %18 : vector<8x256xf32>
    %cst_8 = arith.constant 0.000000e+00 : f32
    %20 = vector.broadcast %cst_8 : f32 to vector<8x256xf32>
    %21 = arith.cmpf oge, %3, %20 : vector<8x256xf32>
    %cst_9 = arith.constant 1.000000e+00 : f32
    %22 = vector.broadcast %cst_9 : f32 to vector<8x256xf32>
    %23 = arith.select %21, %22, %13 : vector<8x256xi1>, vector<8x256xf32>
    %cst_10 = arith.constant 1.000000e+00 : f32
    %24 = vector.broadcast %cst_10 : f32 to vector<8x256xf32>
    %25 = arith.addf %24, %13 : vector<8x256xf32>
    %26 = arith.divf %23, %25 : vector<8x256xf32>
    %cst_11 = arith.constant 1.000000e+00 : f32
    %27 = vector.broadcast %cst_11 : f32 to vector<8x256xf32>
    %28 = arith.subf %27, %26 : vector<8x256xf32>
    %29 = arith.select %6, %28, %26 : vector<8x256xi1>, vector<8x256xf32>
    %30 = arith.mulf %29, %29 : vector<8x256xf32>
    %31 = arith.mulf %9, %30 : vector<8x256xf32>
    %32 = arith.mulf %31, %19 : vector<8x256xf32>
    %c0_12 = arith.constant 0 : index
    %c0_13 = arith.constant 0 : index
    %33 = vector.load %arg5[%c0_12, %c0_13] : memref<8x256xf32, #tpu.memory_space<vmem>>, vector<8x256xf32>
    %34 = arith.addf %33, %32 : vector<8x256xf32>
    %c0_14 = arith.constant 0 : index
    %c0_15 = arith.constant 0 : index
    %35 = vector.load %arg5[%c0_14, %c0_15] : memref<8x256xf32, #tpu.memory_space<vmem>>, vector<8x256xf32>
    tpu.vector_store %arg5[%c0_14, %c0_15], %34 {strides = array<i32>} : memref<8x256xf32, #tpu.memory_space<vmem>>, vector<8x256xf32>,
    %c0_i32_16 = arith.constant 0 : i32
    %36 = arith.cmpi eq, %arg1, %c0_i32_16 : i32
    %37 = arith.extui %36 : i1 to i32
    %c0_i32_17 = arith.constant 0 : i32
    %38 = arith.cmpi ne, %37, %c0_i32_17 : i32
    scf.if %38 {
      %c0_18 = arith.constant 0 : index
      %c0_19 = arith.constant 0 : index
      %39 = vector.load %arg5[%c0_18, %c0_19] : memref<8x256xf32, #tpu.memory_space<vmem>>, vector<8x256xf32>
      %cst_20 = arith.constant dense<0.000000e+00> : vector<256xf32>
      %40 = vector.multi_reduction <add>, %39, %cst_20 [0] : vector<8x256xf32> to vector<256xf32>
      %41 = vector.shape_cast %40 : vector<256xf32> to vector<1x256xf32>
      %42 = vector.shape_cast %41 : vector<1x256xf32> to vector<1x1x256xf32>
      %c0_21 = arith.constant 0 : index
      %c0_22 = arith.constant 0 : index
      %c0_23 = arith.constant 0 : index
      %43 = vector.load %arg4[%c0_21, %c0_22, %c0_23] : memref<1x1x256xf32, #tpu.memory_space<vmem>>, vector<1x1x256xf32>
      tpu.vector_store %arg4[%c0_21, %c0_22, %c0_23], %42 {strides = array<i32>} : memref<1x1x256xf32, #tpu.memory_space<vmem>>, vector<1x1x256xf32>,
    } else {
    }
    return
  }
  func.func @transform_0(%arg0: i32, %arg1: i32) -> (i32, i32) {
    %c1_i32 = arith.constant 1 : i32
    %0 = arith.muli %arg0, %c1_i32 : i32
    %1 = arith.addi %0, %arg1 : i32
    %c0_i32 = arith.constant 0 : i32
    %c0_i32_0 = arith.constant 0 : i32
    return %1, %c0_i32 : i32, i32
  }
  func.func @transform_1(%arg0: i32, %arg1: i32) -> (i32, i32) {
    %c1_i32 = arith.constant 1 : i32
    %0 = arith.muli %arg0, %c1_i32 : i32
    %1 = arith.addi %0, %arg1 : i32
    %c0_i32 = arith.constant 0 : i32
    %c0_i32_0 = arith.constant 0 : i32
    return %1, %c0_i32 : i32, i32
  }
  func.func @transform_2(%arg0: i32, %arg1: i32) -> (i32, i32, i32) {
    %c0_i32 = arith.constant 0 : i32
    %c0_i32_0 = arith.constant 0 : i32
    %c0_i32_1 = arith.constant 0 : i32
    return %arg0, %c0_i32, %c0_i32_0 : i32, i32, i32
  }
}

</mosaic_0001>

<llo_original>
// kernel: tpu_custom_call.1
$region0: #{tpu_custom_call.1}
  #allocation0 [shape = 'u32[]', space=smem, size = 0x4, offset = 0x4, fixed_abs, tag = 'smem constant byte address 0x4 - core index']
  #allocation1 [shape = 'u32[144,128]{1,0:T(1,128)}', space=vmem, size = 0x12000, scoped, tag = 'internal scratch']
  #allocation2 [shape = 'f32[8,256]{1,0:T(8,128)}', space=vmem, size = 0x2000, scoped, tag = 'scratch operand']
  %s0 = inlined_call_operand.hbm [shape: f32[8,256], index: 0, kind: input, shape index: {}]
  %s1 = inlined_call_operand.hbm [shape: f32[8,256], index: 1, kind: input, shape index: {}]
  %s2 = inlined_call_operand.hbm [shape: f32[1,1,256], index: 2, kind: output, shape index: {}]
  %s3 = sld [smem:[#allocation0]]
  $region34: #{tpu_custom_call.1} parent=0
    _
  %s5 = ssub.s32 1, %s3
  %s6 = scalar_select 0, %s5, %s3
  $region1: #{tpu_custom_call.1} parent=0
    #allocation3 [shape = 'u8[8192]{0}', space=vmem, size = 0x2000, scoped, tag = 'input window, operand 0, single buffered']
    #allocation4 [shape = 's32[1]{0}', space=sflag, size = 0x4, scoped, tag = 'scoped memory for tpu_custom_call.1']
    #allocation5 [shape = 's32[1]{0}', space=sflag, size = 0x4, scoped, tag = 'scoped memory for tpu_custom_call.1']
    #allocation6 [shape = 'u8[8192]{0}', space=vmem, size = 0x2000, scoped, tag = 'input window, operand 1, single buffered']
    #allocation7 [shape = 's32[1]{0}', space=sflag, size = 0x4, scoped, tag = 'scoped memory for tpu_custom_call.1']
    #allocation8 [shape = 'u8[1024]{0}', space=vmem, size = 0x400, scoped, tag = 'output window, operand 0, single buffered']
    %7 = vsyncpa [#allocation4], 0
    %8 = vsyncpa [#allocation7], 0
    %9 = vsyncpa [#allocation5], 0
    // Predicated region
    $region2: #{tpu_custom_call.1} parent=1 // pred_check
      _
    $region3: #{tpu_custom_call.1} parent=1 // pred_check_branch
      %11 = sbr.rel (0) target = $region5
    $region4: #{tpu_custom_call.1} parent=1 // pred_region
      %s12 = sadd.s32 0, 0
      %s14 = ssub.s32 256, 256
      %15 = vsyncadd [#allocation4], %s14
      %s16 = smul.addr %s12, 2
      %s17 = smul.addr %s16, 128
      %s18 = scalar_lea.hbm %s0, %s17
      %s20 = sshll.u32 [#allocation3], 4
      %s21 = int_to_ptr.vmem [resolvable:$true] %s20
      %23 = dma.hbm_to_vmem [thread:$0]  %s18, 256, %s21, [#allocation4]
    $region5: #{tpu_custom_call.1} parent=1 // pred_fallthru
      _
    // Predicated region
    $region6: #{tpu_custom_call.1} parent=1 // pred_check
      _
    $region7: #{tpu_custom_call.1} parent=1 // pred_check_branch
      %25 = sbr.rel (0) target = $region9
    $region8: #{tpu_custom_call.1} parent=1 // pred_region
      %s26 = sadd.s32 0, 0
      %s28 = ssub.s32 256, 256
      %29 = vsyncadd [#allocation7], %s28
      %s30 = smul.addr %s26, 2
      %s31 = smul.addr %s30, 128
      %s32 = scalar_lea.hbm %s1, %s31
      %s34 = sshll.u32 [#allocation6], 4
      %s35 = int_to_ptr.vmem [resolvable:$true] %s34
      %37 = dma.hbm_to_vmem [thread:$0]  %s32, 256, %s35, [#allocation7]
    $region9: #{tpu_custom_call.1} parent=1 // pred_fallthru
      _
    // Predicated region
    $region10: #{tpu_custom_call.1} parent=1 // pred_check
      _
    $region11: #{tpu_custom_call.1} parent=1 // pred_check_branch
      %39 = sbr.rel (0) target = $region13
    $region12: #{tpu_custom_call.1} parent=1 // pred_region
      %40 = dma.done [#allocation4], 256
    $region13: #{tpu_custom_call.1} parent=1 // pred_fallthru
      _
    // Predicated region
    $region14: #{tpu_custom_call.1} parent=1 // pred_check
      _
    $region15: #{tpu_custom_call.1} parent=1 // pred_check_branch
      %42 = sbr.rel (0) target = $region17
    $region16: #{tpu_custom_call.1} parent=1 // pred_region
      %43 = dma.done [#allocation7], 256
    $region17: #{tpu_custom_call.1} parent=1 // pred_fallthru
      _
    %s44 = sadd.s32 0, 0
    %s45 = sadd.s32 0, 0
    %p46 = scmp.eq.s32.totalorder 0, 0
    // Predicated region
    $region18: #{tpu_custom_call.1} parent=1 // pred_check
      %p47 = pneg %p46
    $region19: #{tpu_custom_call.1} parent=1 // pred_check_branch
      %49 = sbr.rel (%p47) target = $region21
    $region20: #{tpu_custom_call.1} parent=1 // pred_region
      %50 = vst [vmem:[#allocation2] sm:$0xff] 0.0
      %51 = vst [vmem:[#allocation2 + $0x8] sm:$0xff] 0.0
    $region21: #{tpu_custom_call.1} parent=1 // pred_fallthru
      _
    %v52 = vld [vmem:[#allocation3] sm:$0xff]
    %v53 = vld [vmem:[#allocation3 + $0x8] sm:$0xff]
    %v54 = vld [vmem:[#allocation6] sm:$0xff]
    %v55 = vld [vmem:[#allocation6 + $0x8] sm:$0xff]
    %vm56 = vcmp.eq.f32.partialorder %v54, 1.0
    %vm57 = vcmp.eq.f32.partialorder %v55, 1.0
    %v58 = vsel %vm56, 0.25, 0.75
    %v59 = vsel %vm57, 0.25, 0.75
    %v60 = vand.u32 2147483647, %v52
    %v61 = vand.u32 2147483647, %v53
    %v62 = vsub.f32 0.0, %v60
    %v63 = vsub.f32 0.0, %v61
    %v64 = vmul.f32 %v62, 1.442695
    %v65 = vpow.pop %v64
    %v66 = vmul.f32 %v63, 1.442695
    %v67 = vpow.pop %v66
    %v68 = vmax.f32 %v52, 0.0
    %v69 = vmax.f32 %v53, 0.0
    %v70 = vmul.f32 %v52, %v54
    %v71 = vmul.f32 %v53, %v55
    %v72 = vsub.f32 %v68, %v70
    %v73 = vsub.f32 %v69, %v71
    %v74 = vadd.f32 %v65, 1.0
    %v75 = vlog2.pop %v74
    %v76 = vmul.f32 %v75, 0.6931472
    %v77 = vmul.f32 -0.5, %v65
    %v78 = vadd.f32 %v77, 1.0
    %v79 = vmul.f32 %v78, %v65
    %v80 = vand.u32 2147483647, %v65
    %vm81 = vcmp.lt.f32.partialorder %v80, 0.0004427343
    %v82 = vsel %vm81, %v79, %v76
    %v83 = vadd.f32 %v67, 1.0
    %v84 = vlog2.pop %v83
    %v85 = vmul.f32 %v84, 0.6931472
    %v86 = vmul.f32 -0.5, %v67
    %v87 = vadd.f32 %v86, 1.0
    %v88 = vmul.f32 %v87, %v67
    %v89 = vand.u32 2147483647, %v67
    %vm90 = vcmp.lt.f32.partialorder %v89, 0.0004427343
    %v91 = vsel %vm90, %v88, %v85
    %v92 = vadd.f32 %v72, %v82
    %v93 = vadd.f32 %v73, %v91
    %vm94 = vcmp.ge.f32.partialorder %v52, 0.0
    %vm95 = vcmp.ge.f32.partialorder %v53, 0.0
    %v96 = vsel %vm94, 1.0, %v65
    %v97 = vsel %vm95, 1.0, %v67
    %v98 = vadd.f32 %v65, 1.0
    %v99 = vadd.f32 %v67, 1.0
    %v100 = vrcp.pop %v98
    %v101 = vmul.f32 %v96, %v100
    %v102 = vrcp.pop %v99
    %v103 = vmul.f32 %v97, %v102
    %v104 = vsub.f32 1.0, %v101
    %v105 = vsub.f32 1.0, %v103
    %v106 = vsel %vm56, %v104, %v101
    %v107 = vsel %vm57, %v105, %v103
    %v108 = vmul.f32 %v106, %v106
    %v109 = vmul.f32 %v107, %v107
    %v110 = vmul.f32 %v58, %v108
    %v111 = vmul.f32 %v59, %v109
    %v112 = vmul.f32 %v110, %v92
    %v113 = vmul.f32 %v111, %v93
    %v114 = vld [vmem:[#allocation2] sm:$0xff]
    %v115 = vld [vmem:[#allocation2 + $0x8] sm:$0xff]
    %v116 = vadd.f32 %v114, %v112
    %v117 = vadd.f32 %v115, %v113
    %118 = vst [vmem:[#allocation2] sm:$0xff] %v116
    %119 = vst [vmem:[#allocation2 + $0x8] sm:$0xff] %v117
    // Predicated region
    $region22: #{tpu_custom_call.1} parent=1 // pred_check
      %p120 = pneg %p46
    $region23: #{tpu_custom_call.1} parent=1 // pred_check_branch
      %122 = sbr.rel (%p120) target = $region25
    $region24: #{tpu_custom_call.1} parent=1 // pred_region
      %v123 = vld [vmem:[#allocation2] sm:$0xff]
      %v124 = vld [vmem:[#allocation2 + $0x8] sm:$0xff]
      %v125 = vrot.slane %v123, 4
      %v126 = vadd.f32 %v123, %v125
      %v127 = vrot.slane %v126, 2
      %v128 = vadd.f32 %v126, %v127
      %v129 = vrot.slane %v128, 1
      %v130 = vadd.f32 %v128, %v129
      %v131 = vrot.slane %v124, 4
      %v132 = vadd.f32 %v124, %v131
      %v133 = vrot.slane %v132, 2
      %v134 = vadd.f32 %v132, %v133
      %v135 = vrot.slane %v134, 1
      %v136 = vadd.f32 %v134, %v135
      %v139 = vcombine.low %v130, %v136
      %v141 = vunpack.c.l.s4 1966171168
      %v142 = vunpack.c.0.s8 %v141
      %v143 = vlaneseq
      %v144 = vshrl.u32 %v143, 7
      %v145 = vsub.s32 %v142, %v144
      %v146 = vrot.slane %v139, %v145
      %v148 = vunpack.c.l.s4 1966171168
      %v149 = vunpack.c.0.s8 %v148
      %v150 = vlaneseq
      %v151 = vshrl.u32 %v150, 7
      %v152 = vsub.s32 %v149, %v151
      %v153 = vrot.slane %v146, %v152
      %v155 = vlaneseq
      %vm156 = vcmp.ge.s32.totalorder %v155, 0
      %vm157 = vcmp.lt.s32.totalorder %v155, 256
      %vm158 = vmand %vm156, %vm157
      %159 = vst.msk [vmem:[#allocation8] sm:$0x3] %vm158, %v153
    $region25: #{tpu_custom_call.1} parent=1 // pred_fallthru
      _
    // Predicated region
    $region26: #{tpu_custom_call.1} parent=1 // pred_check
      _
    $region27: #{tpu_custom_call.1} parent=1 // pred_check_branch
      %161 = sbr.rel (0) target = $region29
    $region28: #{tpu_custom_call.1} parent=1 // pred_region
      %s163 = ssub.s32 32, 32
      %164 = vsyncadd [#allocation5], %s163
      %s166 = sshll.u32 [#allocation8], 4
      %s167 = int_to_ptr.vmem [resolvable:$true] %s166
      %169 = dma.vmem_to_hbm [thread:$0]  %s167, 32, %s2, [#allocation5]
    $region29: #{tpu_custom_call.1} parent=1 // pred_fallthru
      _
    // Predicated region
    $region30: #{tpu_custom_call.1} parent=1 // pred_check
      _
    $region31: #{tpu_custom_call.1} parent=1 // pred_check_branch
      %171 = sbr.rel (0) target = $region33
    $region32: #{tpu_custom_call.1} parent=1 // pred_region
      %172 = dma.done [#allocation5], 32
    $region33: #{tpu_custom_call.1} parent=1 // pred_fallthru
      _
    %173 = vsyncpa [#allocation4], 1
    %174 = vsyncpa [#allocation7], 1
    %175 = vsyncpa [#allocation5], 1

</llo_original>
